<compile_context>
chip_gen: v7x
topology: tpu7x:2x2x1
jax: 0.10.0
libtpu: 0.0.40
codegen_flags: <defaults>
</compile_context>

<pallas_src>
import functools

import jax
import jax.numpy as jnp
from jax.experimental import pallas as pl
from jax.experimental.pallas import tpu as pltpu


def _round_up(v, m):
    return ((v + m - 1) // m) * m


def _feature_norm_kernel(x_ref, scale_ref, bias_ref, o_ref, *, eps, inv_l, inv_lm1):
    """x_ref: (tr, L) tile. scale_ref/bias_ref: (tr, 1) per-step tiles."""
    x = x_ref[...].astype(jnp.float32)                      # (tr, L)
    scale = scale_ref[...]                                  # (tr, 1)
    bias = bias_ref[...]                                    # (tr, 1)

    # Two-pass mean/variance (robust to large offsets); last dim is the true L,
    # so no lane masking and exact divisors.
    mean = jnp.sum(x, axis=1, keepdims=True) * jnp.float32(inv_l)
    d = x - mean
    var = jnp.sum(d * d, axis=1, keepdims=True) * jnp.float32(inv_lm1)

    std = jnp.sqrt(var)
    # eps added to the std (not variance) — matches the PyTorch module exactly.
    inv = jax.lax.rsqrt(std + jnp.float32(eps))             # EUP
    a = scale * inv                                         # per-row (tr, 1)
    b = bias - mean * a                                     # per-row (tr, 1)
    o_ref[...] = (x * a + b).astype(o_ref.dtype)


def _choose_row_tile(R, L):
    """Pick the row-tile size: ~<=2 MiB blocks, >= ~8 grid steps when possible."""
    if R <= 8:
        return R                                   # block dim equal to full dim
    bytes_per_row = 4 * _round_up(L, 128)          # f32, lane-padded in VMEM
    target_bytes = 2 << 20
    tr = max(8, (target_bytes // bytes_per_row) // 8 * 8)
    # Keep several grid steps so DMA/compute overlap and both v7x TCs get work.
    max_steps = pl.cdiv(R, 8)
    desired_steps = min(8, max_steps)
    tr = min(tr, _round_up(pl.cdiv(R, desired_steps), 8))
    tr = min(tr, _round_up(R, 8))
    return tr


def feature_norm(x, scale, bias, eps=0.001):
    """x: (N, C, H, W) float32; scale/bias: (1, C, 1, 1) float32."""
    N, C, H, W = x.shape
    R = N * C
    L = H * W

    tr = _choose_row_tile(R, L)
    grid = (pl.cdiv(R, tr),)

    # Flatten to rows; no padding — Pallas masks the ragged last row block.
    x2 = x.reshape(R, L)
    scale_rows = jnp.broadcast_to(scale.reshape(1, C), (N, C)).reshape(R, 1)
    bias_rows = jnp.broadcast_to(bias.reshape(1, C), (N, C)).reshape(R, 1)

    inv_l = 1.0 / L
    inv_lm1 = (1.0 / (L - 1)) if L > 1 else float("nan")  # torch.std of 1 elem -> NaN
    kernel = functools.partial(
        _feature_norm_kernel, eps=eps, inv_l=inv_l, inv_lm1=inv_lm1)

    # Footprint: 2 in + 2 out buffers of the x block, plus tiny (tr,1) param
    # blocks (lane-padded to 128 in VMEM), plus headroom. Keep <= 32 MiB (v7x).
    Lp = _round_up(L, 128)
    vmem_bytes = 4 * tr * Lp * 4 + 4 * tr * 128 * 4 + (2 << 20)
    vmem_bytes = int(min(max(vmem_bytes, 4 << 20), 32 << 20))

    cost = pl.CostEstimate(
        flops=5 * R * L,
        transcendentals=2 * R,
        bytes_accessed=2 * R * L * 4 + 2 * R * 4,
    )

    out2 = pl.pallas_call(
        kernel,
        out_shape=jax.ShapeDtypeStruct((R, L), x.dtype),
        grid_spec=pltpu.PrefetchScalarGridSpec(
            num_scalar_prefetch=0,
            grid=grid,
            in_specs=[
                pl.BlockSpec((tr, L), lambda i: (i, 0)),   # x rows
                pl.BlockSpec((tr, 1), lambda i: (i, 0)),   # scale rows (per-step)
                pl.BlockSpec((tr, 1), lambda i: (i, 0)),   # bias rows (per-step)
            ],
            out_specs=pl.BlockSpec((tr, L), lambda i: (i, 0)),
        ),
        compiler_params=pltpu.CompilerParams(
            dimension_semantics=("parallel",),
            vmem_limit_bytes=vmem_bytes,
        ),
        cost_estimate=cost,
    )(x2, scale_rows, bias_rows)

    return out2.reshape(N, C, H, W)


def feature_norm_ref(x, scale, bias, eps=0.001):
    mean = jnp.mean(x, axis=(2, 3), keepdims=True)
    var = jnp.sum((x - mean) ** 2, axis=(2, 3), keepdims=True) / (
        x.shape[2] * x.shape[3] - 1)
    std = jnp.sqrt(var)
    return scale * ((x - mean) / jnp.sqrt(std + eps)) + bias


if __name__ == "__main__":
    key = jax.random.PRNGKey(0)
    k1, k2, k3, k4 = jax.random.split(key, 4)

    # Case 1: module-default shapes/params (scale=ones, bias=zeros like __init__).
    N, C, H, W = 2, 4, 16, 16
    x = jax.random.normal(k1, (N, C, H, W), dtype=jnp.float32)
    scale = jnp.ones((1, C, 1, 1), dtype=jnp.float32)
    bias = jnp.zeros((1, C, 1, 1), dtype=jnp.float32)
    out = jax.block_until_ready(feature_norm(x, scale, bias))
    ref = feature_norm_ref(x, scale, bias)
    assert jnp.allclose(out, ref, atol=1e-4, rtol=1e-4), "mismatch vs reference (case 1)"

    # Case 2: awkward shape (H*W not /128, N*C not /8) + non-trivial affine,
    # exercising the ragged last row block and non-128 lane dim.
    N2, C2, H2, W2 = 3, 5, 7, 7
    x2 = jax.random.normal(k2, (N2, C2, H2, W2), dtype=jnp.float32)
    scale2 = 1.0 + 0.1 * jax.random.normal(k3, (1, C2, 1, 1), dtype=jnp.float32)
    bias2 = 0.1 * jnp.arange(C2, dtype=jnp.float32).reshape(1, C2, 1, 1)
    out2 = jax.block_until_ready(feature_norm(x2, scale2, bias2))
    ref2 = feature_norm_ref(x2, scale2, bias2)
    assert jnp.allclose(out2, ref2, atol=1e-4, rtol=1e-4), "mismatch vs reference (case 2)"

    # Case 3: mid-size shape exercising a multi-step grid (R=64 -> 8 steps).
    N3, C3, H3, W3 = 2, 32, 14, 14
    x3 = jax.random.normal(k4, (N3, C3, H3, W3), dtype=jnp.float32) + 3.0
    scale3 = 1.0 + 0.05 * jnp.arange(C3, dtype=jnp.float32).reshape(1, C3, 1, 1)
    bias3 = 0.01 * jnp.arange(C3, dtype=jnp.float32).reshape(1, C3, 1, 1)
    out3 = jax.block_until_ready(feature_norm(x3, scale3, bias3))
    ref3 = feature_norm_ref(x3, scale3, bias3)
    assert jnp.allclose(out3, ref3, atol=1e-4, rtol=1e-4), "mismatch vs reference (case 3)"

    print("KERNEL_OK")
</pallas_src>

<mosaic_0001>
module attributes {stable_mosaic.version = 11 : i64} {
  func.func @_feature_norm_kernel(%arg0: i32, %arg1: memref<8x256xf32, #tpu.memory_space<vmem>>, %arg2: memref<8x1xf32, #tpu.memory_space<vmem>>, %arg3: memref<8x1xf32, #tpu.memory_space<vmem>>, %arg4: memref<8x256xf32, #tpu.memory_space<vmem>>) attributes {dimension_semantics = [#tpu.dimension_semantics<parallel>], iteration_bounds = array<i64: 1>, scalar_prefetch = 0 : i64, scratch_operands = 0 : i64, tpu.core_type = #tpu.core_type<tc>, window_params = [{transform_indices = @transform_0, window_bounds = array<i64: 8, 256>}, {transform_indices = @transform_1, window_bounds = array<i64: 8, 1>}, {transform_indices = @transform_2, window_bounds = array<i64: 8, 1>}, {transform_indices = @transform_3, window_bounds = array<i64: 8, 256>}]} {
    %c0 = arith.constant 0 : index
    %c0_0 = arith.constant 0 : index
    %0 = vector.load %arg1[%c0, %c0_0] : memref<8x256xf32, #tpu.memory_space<vmem>>, vector<8x256xf32>
    %c0_1 = arith.constant 0 : index
    %c0_2 = arith.constant 0 : index
    %1 = vector.load %arg2[%c0_1, %c0_2] : memref<8x1xf32, #tpu.memory_space<vmem>>, vector<8x1xf32>
    %c0_3 = arith.constant 0 : index
    %c0_4 = arith.constant 0 : index
    %2 = vector.load %arg3[%c0_3, %c0_4] : memref<8x1xf32, #tpu.memory_space<vmem>>, vector<8x1xf32>
    %cst = arith.constant dense<0.000000e+00> : vector<8xf32>
    %3 = vector.multi_reduction <add>, %0, %cst [1] : vector<8x256xf32> to vector<8xf32>
    %4 = vector.shape_cast %3 : vector<8xf32> to vector<8x1xf32>
    %cst_5 = arith.constant 3.906250e-03 : f32
    %5 = vector.broadcast %cst_5 : f32 to vector<8x1xf32>
    %6 = arith.mulf %4, %5 : vector<8x1xf32>
    %7 = vector.broadcast %6 : vector<8x1xf32> to vector<8x256xf32>
    %8 = arith.subf %0, %7 : vector<8x256xf32>
    %9 = arith.mulf %8, %8 : vector<8x256xf32>
    %cst_6 = arith.constant dense<0.000000e+00> : vector<8xf32>
    %10 = vector.multi_reduction <add>, %9, %cst_6 [1] : vector<8x256xf32> to vector<8xf32>
    %11 = vector.shape_cast %10 : vector<8xf32> to vector<8x1xf32>
    %cst_7 = arith.constant 0.00392156886 : f32
    %12 = vector.broadcast %cst_7 : f32 to vector<8x1xf32>
    %13 = arith.mulf %11, %12 : vector<8x1xf32>
    %14 = math.sqrt %13 : vector<8x1xf32>
    %cst_8 = arith.constant 1.000000e-03 : f32
    %15 = vector.broadcast %cst_8 : f32 to vector<8x1xf32>
    %16 = arith.addf %14, %15 : vector<8x1xf32>
    %17 = math.rsqrt %16 : vector<8x1xf32>
    %18 = arith.mulf %1, %17 : vector<8x1xf32>
    %19 = arith.mulf %6, %18 : vector<8x1xf32>
    %20 = arith.subf %2, %19 : vector<8x1xf32>
    %21 = vector.broadcast %18 : vector<8x1xf32> to vector<8x256xf32>
    %22 = arith.mulf %0, %21 : vector<8x256xf32>
    %23 = vector.broadcast %20 : vector<8x1xf32> to vector<8x256xf32>
    %24 = arith.addf %22, %23 : vector<8x256xf32>
    %c0_9 = arith.constant 0 : index
    %c0_10 = arith.constant 0 : index
    %25 = vector.load %arg4[%c0_9, %c0_10] : memref<8x256xf32, #tpu.memory_space<vmem>>, vector<8x256xf32>
    tpu.vector_store %arg4[%c0_9, %c0_10], %24 {strides = array<i32>} : memref<8x256xf32, #tpu.memory_space<vmem>>, vector<8x256xf32>,
    return
  }
  func.func @transform_0(%arg0: i32) -> (i32, i32) {
    %c0_i32 = arith.constant 0 : i32
    %c0_i32_0 = arith.constant 0 : i32
    return %arg0, %c0_i32 : i32, i32
  }
  func.func @transform_1(%arg0: i32) -> (i32, i32) {
    %c0_i32 = arith.constant 0 : i32
    %c0_i32_0 = arith.constant 0 : i32
    return %arg0, %c0_i32 : i32, i32
  }
  func.func @transform_2(%arg0: i32) -> (i32, i32) {
    %c0_i32 = arith.constant 0 : i32
    %c0_i32_0 = arith.constant 0 : i32
    return %arg0, %c0_i32 : i32, i32
  }
  func.func @transform_3(%arg0: i32) -> (i32, i32) {
    %c0_i32 = arith.constant 0 : i32
    %c0_i32_0 = arith.constant 0 : i32
    return %arg0, %c0_i32 : i32, i32
  }
}

</mosaic_0001>

<llo_original>
// kernel: tpu_custom_call.1
$region0: #{tpu_custom_call.1}
  #allocation0 [shape = 'u32[]', space=smem, size = 0x4, offset = 0x4, fixed_abs, tag = 'smem constant byte address 0x4 - core index']
  #allocation1 [shape = 'u32[144,128]{1,0:T(1,128)}', space=vmem, size = 0x12000, scoped, tag = 'internal scratch']
  %s0 = inlined_call_operand.vmem [shape: f32[8,256], index: 0, kind: input, shape index: {}]
  %s1 = inlined_call_operand.vmem [shape: f32[8,1], index: 1, kind: input, shape index: {}]
  %s2 = inlined_call_operand.vmem [shape: f32[8,1], index: 2, kind: input, shape index: {}]
  %s3 = inlined_call_operand.hbm [shape: f32[8,256], index: 3, kind: output, shape index: {}]
  %s4 = sld [smem:[#allocation0]]
  $region22: #{tpu_custom_call.1} parent=0
    _
  %s6 = ssub.s32 1, %s4
  %s7 = scalar_select 0, %s6, %s4
  $region1: #{tpu_custom_call.1} parent=0
    #allocation2 [shape = 'u8[8192]{0}', space=vmem, size = 0x2000, scoped, tag = 'output window, operand 0, single buffered']
    #allocation3 [shape = 's32[1]{0}', space=sflag, size = 0x4, scoped, tag = 'scoped memory for tpu_custom_call.1']
    %8 = vsyncpa [#allocation3], 0
    // Predicated region
    $region2: #{tpu_custom_call.1} parent=1 // pred_check
      _
    $region3: #{tpu_custom_call.1} parent=1 // pred_check_branch
      %10 = sbr.rel (0) target = $region5
    $region4: #{tpu_custom_call.1} parent=1 // pred_region
      _
    $region5: #{tpu_custom_call.1} parent=1 // pred_fallthru
      _
    // Predicated region
    $region6: #{tpu_custom_call.1} parent=1 // pred_check
      _
    $region7: #{tpu_custom_call.1} parent=1 // pred_check_branch
      %12 = sbr.rel (0) target = $region9
    $region8: #{tpu_custom_call.1} parent=1 // pred_region
      _
    $region9: #{tpu_custom_call.1} parent=1 // pred_fallthru
      _
    // Predicated region
    $region10: #{tpu_custom_call.1} parent=1 // pred_check
      _
    $region11: #{tpu_custom_call.1} parent=1 // pred_check_branch
      %14 = sbr.rel (0) target = $region13
    $region12: #{tpu_custom_call.1} parent=1 // pred_region
      _
    $region13: #{tpu_custom_call.1} parent=1 // pred_fallthru
      _
    %v15 = vld [vmem:[%s0] sm:$0xff]
    %v16 = vld [vmem:[%s0 + $0x8] sm:$0xff]
    %v17 = vld [vmem:[%s1] sm:$0xff]
    %v18 = vld [vmem:[%s2] sm:$0xff]
    %v19 = vadd.f32 %v15, %v16
    %20 = vadd.xlane.f32.xlu0 %v19
    %v21 = vpop.xlane.xlu0 %20
    %v22 = vmul.f32 %v21, 0.00390625
    %v23 = vsub.f32 %v15, %v22
    %v24 = vsub.f32 %v16, %v22
    %v25 = vmul.f32 %v23, %v23
    %v26 = vmul.f32 %v24, %v24
    %v27 = vadd.f32 %v25, %v26
    %28 = vadd.xlane.f32.xlu0 %v27
    %v29 = vpop.xlane.xlu0 %28
    %v30 = vmul.f32 %v29, 0.003921569
    %v31 = vrsqrt.pop %v30
    %v32 = vmul.f32 %v30, %v31
    %vm33 = vcmp.eq.f32.partialorder %v30, inf
    %v34 = vsel %vm33, %v30, %v32
    %vm35 = vcmp.eq.f32.partialorder %v30, 0.0
    %v36 = vand.u32 %v30, 2147483648
    %v37 = vsel %vm35, %v36, %v34
    %v38 = vadd.f32 %v37, 0.001
    %v39 = vrsqrt.pop %v38
    %v40 = vmul.f32 %v17, %v39
    %v41 = vmul.f32 %v22, %v40
    %v42 = vsub.f32 %v18, %v41
    %44 = vset.pattern.permute.xlu0 0
    %45 = vperm.xlu0 %44, %v40
    %v46 = vpop.permute.xlu0 %45
    %v48 = vmul.f32 %v15, %v46
    %v49 = vmul.f32 %v16, %v46
    %51 = vset.pattern.permute.xlu0 0
    %52 = vperm.xlu0 %51, %v42
    %v53 = vpop.permute.xlu0 %52
    %v55 = vadd.f32 %v48, %v53
    %v56 = vadd.f32 %v49, %v53
    %57 = vst [vmem:[#allocation2] sm:$0xff] %v55
    %58 = vst [vmem:[#allocation2 + $0x8] sm:$0xff] %v56
    // Predicated region
    $region14: #{tpu_custom_call.1} parent=1 // pred_check
      _
    $region15: #{tpu_custom_call.1} parent=1 // pred_check_branch
      %60 = sbr.rel (0) target = $region17
    $region16: #{tpu_custom_call.1} parent=1 // pred_region
      %s62 = ssub.s32 256, 256
      %63 = vsyncadd [#allocation3], %s62
      %s65 = sshll.u32 [#allocation2], 4
      %s66 = int_to_ptr.vmem [resolvable:$true] %s65
      %68 = dma.vmem_to_hbm [thread:$0]  %s66, 256, %s3, [#allocation3]
    $region17: #{tpu_custom_call.1} parent=1 // pred_fallthru
      _
    // Predicated region
    $region18: #{tpu_custom_call.1} parent=1 // pred_check
      _
    $region19: #{tpu_custom_call.1} parent=1 // pred_check_branch
      %70 = sbr.rel (0) target = $region21
    $region20: #{tpu_custom_call.1} parent=1 // pred_region
      %71 = dma.done [#allocation3], 256
    $region21: #{tpu_custom_call.1} parent=1 // pred_fallthru
      _
    %72 = vsyncpa [#allocation3], 1

</llo_original>
